<compile_context>
chip_gen: v6e
topology: v6e:2x2x1
jax: 0.10.0
libtpu: 0.0.40
codegen_flags: <defaults>
</compile_context>

<pallas_src>
import math

import jax
import jax.numpy as jnp
import numpy as np
from jax.experimental import pallas as pl
from jax.experimental.pallas import tpu as pltpu

D = 32          # feature dim of the flow
HALF = D // 2   # 16
H = 32          # conditioner hidden width
K = 2           # number of coupling layers
LOG2PI = math.log(2.0 * math.pi)


def _flow_log_prob_kernel(xt_ref, w1_ref, b1_ref, w2_ref, b2_ref, out_ref):
    """One batch-tile of flow.log_prob(x), feature-major (batch on lanes).

    xt_ref : (D, TB)         transposed samples (features on sublanes)
    w1_ref : (K, H, HALF)    conditioner layer-1 weights (transposed)
    b1_ref : (K, H, 1)       layer-1 biases (column vectors, lane-broadcast)
    w2_ref : (K, 2*HALF, H)  fused [log-scale ; shift] head weights
    b2_ref : (K, 2*HALF, 1)  fused head biases
    out_ref: (1, TB)         log_prob per sample (lane-dense row)
    """
    # Aligned sublane slices (16 is a multiple of the 8-sublane granule).
    x1 = xt_ref[:HALF, :].astype(jnp.float32)         # (HALF, TB)
    x2 = xt_ref[HALF:, :].astype(jnp.float32)         # (HALF, TB)
    s_acc = jnp.zeros_like(x1)                        # accumulated log-scales

    for k in range(K):                                # static unroll, K small
        # Conditioner MLP on x1: one matmul per layer stage, lane-dense.
        h = jnp.tanh(
            jnp.dot(w1_ref[k], x1, preferred_element_type=jnp.float32)
            + b1_ref[k])                              # (H, TB)
        st = (jnp.dot(w2_ref[k], h, preferred_element_type=jnp.float32)
              + b2_ref[k])                            # (2*HALF, TB) fused s|t
        s = jnp.tanh(st[:HALF, :])                    # bounded log-scale
        t = st[HALF:, :]                              # shift
        # Inverse affine coupling: z2 = (x2 - t) * exp(-s)
        x2 = (x2 - t) * jnp.exp(-s)
        s_acc = s_acc + s
        # Swap halves between layers (the "permutation").
        x1, x2 = x2, x1

    # log_prob = -0.5*D*log(2pi) - sum_features [ 0.5*z^2 + sum_k s_k ]
    a = s_acc + 0.5 * (x1 * x1 + x2 * x2)             # (HALF, TB)
    out_ref[...] = (-jnp.sum(a, axis=0, keepdims=True)
                    - 0.5 * D * LOG2PI)               # (1, TB) full-lane store


def _tensorcores_per_chip():
    """Best-effort detection of TensorCores per chip (v7x has 2)."""
    try:
        kind = jax.devices()[0].device_kind.lower()
    except Exception:
        return 1
    if "v7" in kind:
        return 2
    return 1


def _pick_tb(batch, cores):
    """Lane-aligned batch tile.

    Dual-TC chips: >=2 grid steps, step count divisible by the core count.
    Single-TC chips: one big block (the grid is a serial loop there, so extra
    steps are pure ~0.35us overhead).  A (D, tb) f32 block is 128*tb bytes, so
    even tb=32768 is only 4 MiB -> VMEM never binds.
    """
    if cores >= 2:
        for tb in (8192, 4096, 2048, 1024, 512, 256, 128):
            steps = batch // tb
            if batch % tb == 0 and steps >= 2 and steps % cores == 0:
                return tb
        for tb in (8192, 4096, 2048, 1024, 512, 256, 128):
            if batch % tb == 0 and batch // tb >= 2:
                return tb
        return batch
    # Single TensorCore: one full-array block for small/medium B.
    if batch <= 32768:
        return batch
    for tb in (32768, 16384, 8192, 4096, 2048, 1024, 512, 256, 128):
        if batch % tb == 0:
            return tb
    return batch  # block == full array dims; still valid (padded last tile)


def flow_log_prob(x, w1, b1, w2_s, b2_s, w2_t, b2_t, *, tb=None):
    """FlowWrapper.forward(x): returns log_prob of shape (B,)."""
    B = x.shape[0]
    assert x.shape[1] == D
    if tb is None:
        tb = _pick_tb(B, _tensorcores_per_chip())
    assert B % tb == 0

    # Feature-major input: one transpose (replaces the old half-split copies).
    xt = x.T                                           # (D, B)
    # Transpose / fuse the tiny weights once (negligible work).
    w1t = jnp.swapaxes(w1, 1, 2)                       # (K, H, HALF)
    b1t = jnp.swapaxes(b1, 1, 2)                       # (K, H, 1)
    w2f = jnp.concatenate(
        [jnp.swapaxes(w2_s, 1, 2), jnp.swapaxes(w2_t, 1, 2)], axis=1)  # (K, 2*HALF, H)
    b2f = jnp.concatenate(
        [jnp.swapaxes(b2_s, 1, 2), jnp.swapaxes(b2_t, 1, 2)], axis=1)  # (K, 2*HALF, 1)

    # Advisory cost estimate (lets XLA overlap the tiny custom call).
    matmul_flops = 2 * B * K * (H * HALF + (2 * HALF) * H)
    reduce_flops = B * HALF
    elem_flops = B * (K * (H + 6 * HALF) + 4 * HALF + 2)
    transcendentals = B * K * (H + 2 * HALF)           # tanh(H)+tanh/exp(HALF)
    param_bytes = 4 * int(w1t.size + b1t.size + w2f.size + b2f.size)
    cost = pl.CostEstimate(
        flops=int(matmul_flops + reduce_flops + elem_flops),
        transcendentals=int(transcendentals),
        bytes_accessed=int(4 * (B * D + B) + param_bytes))

    out = pl.pallas_call(
        _flow_log_prob_kernel,
        out_shape=jax.ShapeDtypeStruct((1, B), jnp.float32),
        grid=(B // tb,),
        in_specs=[
            pl.BlockSpec((D, tb), lambda i: (0, i)),
            # Weights: constant index_map -> resident across grid steps.
            pl.BlockSpec((K, H, HALF), lambda i: (0, 0, 0)),
            pl.BlockSpec((K, H, 1), lambda i: (0, 0, 0)),
            pl.BlockSpec((K, 2 * HALF, H), lambda i: (0, 0, 0)),
            pl.BlockSpec((K, 2 * HALF, 1), lambda i: (0, 0, 0)),
        ],
        out_specs=pl.BlockSpec((1, tb), lambda i: (0, i)),
        compiler_params=pltpu.CompilerParams(
            dimension_semantics=("parallel",)),
        cost_estimate=cost,
    )(xt, w1t, b1t, w2f, b2f)
    return out[0]


def flow_log_prob_ref(x, w1, b1, w2_s, b2_s, w2_t, b2_t):
    """Pure-JAX reference for correctness checking."""
    x1, x2 = x[:, :HALF], x[:, HALF:]
    logdet = jnp.zeros((x.shape[0],), jnp.float32)
    for k in range(K):
        h = jnp.tanh(x1 @ w1[k] + b1[k, 0])
        s = jnp.tanh(h @ w2_s[k] + b2_s[k, 0])
        t = h @ w2_t[k] + b2_t[k, 0]
        x2 = (x2 - t) * jnp.exp(-s)
        logdet = logdet - jnp.sum(s, axis=-1)
        x1, x2 = x2, x1
    sq = jnp.sum(x1 * x1, -1) + jnp.sum(x2 * x2, -1)
    return -0.5 * sq - 0.5 * D * LOG2PI + logdet


if __name__ == "__main__":
    key = jax.random.PRNGKey(0)
    k_x, k_w1, k_b1, k_ws, k_bs, k_wt, k_bt = jax.random.split(key, 7)

    B = 256  # small, lane-aligned
    x = jax.random.normal(k_x, (B, D), jnp.float32)

    # Deterministic synthetic flow parameters.
    w1 = 0.1 * jax.random.normal(k_w1, (K, HALF, H), jnp.float32)
    b1 = 0.01 * jax.random.normal(k_b1, (K, 1, H), jnp.float32)
    w2_s = 0.1 * jax.random.normal(k_ws, (K, H, HALF), jnp.float32)
    b2_s = 0.01 * jax.random.normal(k_bs, (K, 1, HALF), jnp.float32)
    w2_t = 0.1 * jax.random.normal(k_wt, (K, H, HALF), jnp.float32)
    b2_t = 0.01 * jax.random.normal(k_bt, (K, 1, HALF), jnp.float32)

    out = jax.block_until_ready(
        flow_log_prob(x, w1, b1, w2_s, b2_s, w2_t, b2_t))
    ref = jax.block_until_ready(
        flow_log_prob_ref(x, w1, b1, w2_s, b2_s, w2_t, b2_t))

    np.testing.assert_allclose(np.asarray(out), np.asarray(ref),
                               rtol=1e-5, atol=1e-4)
    print("KERNEL_OK")
</pallas_src>

<mosaic_0001>
module attributes {stable_mosaic.version = 11 : i64} {
  func.func @_flow_log_prob_kernel(%arg0: i32, %arg1: memref<32x256xf32, #tpu.memory_space<vmem>>, %arg2: memref<2x32x16xf32, #tpu.memory_space<vmem>>, %arg3: memref<2x32x1xf32, #tpu.memory_space<vmem>>, %arg4: memref<2x32x32xf32, #tpu.memory_space<vmem>>, %arg5: memref<2x32x1xf32, #tpu.memory_space<vmem>>, %arg6: memref<1x256xf32, #tpu.memory_space<vmem>>) attributes {dimension_semantics = [#tpu.dimension_semantics<parallel>], iteration_bounds = array<i64: 1>, scalar_prefetch = 0 : i64, scratch_operands = 0 : i64, tpu.core_type = #tpu.core_type<tc>, window_params = [{transform_indices = @transform_0, window_bounds = array<i64: 32, 256>}, {pipeline_mode = #tpu.pipeline_mode<synchronous>, transform_indices = @transform_1, window_bounds = array<i64: 2, 32, 16>}, {pipeline_mode = #tpu.pipeline_mode<synchronous>, transform_indices = @transform_2, window_bounds = array<i64: 2, 32, 1>}, {pipeline_mode = #tpu.pipeline_mode<synchronous>, transform_indices = @transform_3, window_bounds = array<i64: 2, 32, 32>}, {pipeline_mode = #tpu.pipeline_mode<synchronous>, transform_indices = @transform_4, window_bounds = array<i64: 2, 32, 1>}, {transform_indices = @transform_5, window_bounds = array<i64: 1, 256>}]} {
    %c0 = arith.constant 0 : index
    %c0_0 = arith.constant 0 : index
    %0 = vector.load %arg1[%c0, %c0_0] : memref<32x256xf32, #tpu.memory_space<vmem>>, vector<16x256xf32>
    %c16 = arith.constant 16 : index
    %c0_1 = arith.constant 0 : index
    %1 = vector.load %arg1[%c16, %c0_1] : memref<32x256xf32, #tpu.memory_space<vmem>>, vector<16x256xf32>
    %cst = arith.constant 0.000000e+00 : f32
    %2 = vector.broadcast %cst : f32 to vector<16x256xf32>
    %c0_2 = arith.constant 0 : index
    %c0_3 = arith.constant 0 : index
    %c0_4 = arith.constant 0 : index
    %3 = vector.load %arg2[%c0_2, %c0_3, %c0_4] : memref<2x32x16xf32, #tpu.memory_space<vmem>>, vector<1x32x16xf32>
    %4 = vector.shape_cast %3 : vector<1x32x16xf32> to vector<32x16xf32>
    %cst_5 = arith.constant dense<0.000000e+00> : vector<32x256xf32>
    %5 = tpu.matmul %4, %0, %cst_5 {dimension_numbers = #tpu.dot_dimension_numbers<[1], [0], [0], [1], [0, 0, 1, 1], [], []>} : vector<32x16xf32>, vector<16x256xf32>, vector<32x256xf32> -> vector<32x256xf32>
    %c0_6 = arith.constant 0 : index
    %c0_7 = arith.constant 0 : index
    %c0_8 = arith.constant 0 : index
    %6 = vector.load %arg3[%c0_6, %c0_7, %c0_8] : memref<2x32x1xf32, #tpu.memory_space<vmem>>, vector<1x32x1xf32>
    %7 = vector.shape_cast %6 : vector<1x32x1xf32> to vector<32x1xf32>
    %8 = vector.broadcast %7 : vector<32x1xf32> to vector<32x256xf32>
    %9 = arith.addf %5, %8 : vector<32x256xf32>
    %10 = math.tanh %9 : vector<32x256xf32>
    %c0_9 = arith.constant 0 : index
    %c0_10 = arith.constant 0 : index
    %c0_11 = arith.constant 0 : index
    %11 = vector.load %arg4[%c0_9, %c0_10, %c0_11] : memref<2x32x32xf32, #tpu.memory_space<vmem>>, vector<1x32x32xf32>
    %12 = vector.shape_cast %11 : vector<1x32x32xf32> to vector<32x32xf32>
    %cst_12 = arith.constant dense<0.000000e+00> : vector<32x256xf32>
    %13 = tpu.matmul %12, %10, %cst_12 {dimension_numbers = #tpu.dot_dimension_numbers<[1], [0], [0], [1], [0, 0, 1, 1], [], []>} : vector<32x32xf32>, vector<32x256xf32>, vector<32x256xf32> -> vector<32x256xf32>
    %c0_13 = arith.constant 0 : index
    %c0_14 = arith.constant 0 : index
    %c0_15 = arith.constant 0 : index
    %14 = vector.load %arg5[%c0_13, %c0_14, %c0_15] : memref<2x32x1xf32, #tpu.memory_space<vmem>>, vector<1x32x1xf32>
    %15 = vector.shape_cast %14 : vector<1x32x1xf32> to vector<32x1xf32>
    %16 = vector.broadcast %15 : vector<32x1xf32> to vector<32x256xf32>
    %17 = arith.addf %13, %16 : vector<32x256xf32>
    %18 = vector.extract_strided_slice %17 {offsets = [0, 0], sizes = [16, 256], strides = [1, 1]} : vector<32x256xf32> to vector<16x256xf32>
    %19 = math.tanh %18 : vector<16x256xf32>
    %20 = vector.extract_strided_slice %17 {offsets = [16, 0], sizes = [16, 256], strides = [1, 1]} : vector<32x256xf32> to vector<16x256xf32>
    %21 = arith.subf %1, %20 : vector<16x256xf32>
    %cst_16 = arith.constant 0.000000e+00 : f32
    %22 = vector.broadcast %cst_16 : f32 to vector<16x256xf32>
    %23 = arith.subf %22, %19 : vector<16x256xf32>
    %24 = math.exp %23 : vector<16x256xf32>
    %25 = arith.mulf %21, %24 : vector<16x256xf32>
    %26 = arith.addf %2, %19 : vector<16x256xf32>
    %c1 = arith.constant 1 : index
    %c0_17 = arith.constant 0 : index
    %c0_18 = arith.constant 0 : index
    %27 = vector.load %arg2[%c1, %c0_17, %c0_18] : memref<2x32x16xf32, #tpu.memory_space<vmem>>, vector<1x32x16xf32>
    %28 = vector.shape_cast %27 : vector<1x32x16xf32> to vector<32x16xf32>
    %cst_19 = arith.constant dense<0.000000e+00> : vector<32x256xf32>
    %29 = tpu.matmul %28, %25, %cst_19 {dimension_numbers = #tpu.dot_dimension_numbers<[1], [0], [0], [1], [0, 0, 1, 1], [], []>} : vector<32x16xf32>, vector<16x256xf32>, vector<32x256xf32> -> vector<32x256xf32>
    %c1_20 = arith.constant 1 : index
    %c0_21 = arith.constant 0 : index
    %c0_22 = arith.constant 0 : index
    %30 = vector.load %arg3[%c1_20, %c0_21, %c0_22] : memref<2x32x1xf32, #tpu.memory_space<vmem>>, vector<1x32x1xf32>
    %31 = vector.shape_cast %30 : vector<1x32x1xf32> to vector<32x1xf32>
    %32 = vector.broadcast %31 : vector<32x1xf32> to vector<32x256xf32>
    %33 = arith.addf %29, %32 : vector<32x256xf32>
    %34 = math.tanh %33 : vector<32x256xf32>
    %c1_23 = arith.constant 1 : index
    %c0_24 = arith.constant 0 : index
    %c0_25 = arith.constant 0 : index
    %35 = vector.load %arg4[%c1_23, %c0_24, %c0_25] : memref<2x32x32xf32, #tpu.memory_space<vmem>>, vector<1x32x32xf32>
    %36 = vector.shape_cast %35 : vector<1x32x32xf32> to vector<32x32xf32>
    %cst_26 = arith.constant dense<0.000000e+00> : vector<32x256xf32>
    %37 = tpu.matmul %36, %34, %cst_26 {dimension_numbers = #tpu.dot_dimension_numbers<[1], [0], [0], [1], [0, 0, 1, 1], [], []>} : vector<32x32xf32>, vector<32x256xf32>, vector<32x256xf32> -> vector<32x256xf32>
    %c1_27 = arith.constant 1 : index
    %c0_28 = arith.constant 0 : index
    %c0_29 = arith.constant 0 : index
    %38 = vector.load %arg5[%c1_27, %c0_28, %c0_29] : memref<2x32x1xf32, #tpu.memory_space<vmem>>, vector<1x32x1xf32>
    %39 = vector.shape_cast %38 : vector<1x32x1xf32> to vector<32x1xf32>
    %40 = vector.broadcast %39 : vector<32x1xf32> to vector<32x256xf32>
    %41 = arith.addf %37, %40 : vector<32x256xf32>
    %42 = vector.extract_strided_slice %41 {offsets = [0, 0], sizes = [16, 256], strides = [1, 1]} : vector<32x256xf32> to vector<16x256xf32>
    %43 = math.tanh %42 : vector<16x256xf32>
    %44 = vector.extract_strided_slice %41 {offsets = [16, 0], sizes = [16, 256], strides = [1, 1]} : vector<32x256xf32> to vector<16x256xf32>
    %45 = arith.subf %0, %44 : vector<16x256xf32>
    %cst_30 = arith.constant 0.000000e+00 : f32
    %46 = vector.broadcast %cst_30 : f32 to vector<16x256xf32>
    %47 = arith.subf %46, %43 : vector<16x256xf32>
    %48 = math.exp %47 : vector<16x256xf32>
    %49 = arith.mulf %45, %48 : vector<16x256xf32>
    %50 = arith.addf %26, %43 : vector<16x256xf32>
    %51 = arith.mulf %49, %49 : vector<16x256xf32>
    %52 = arith.mulf %25, %25 : vector<16x256xf32>
    %53 = arith.addf %51, %52 : vector<16x256xf32>
    %cst_31 = arith.constant 5.000000e-01 : f32
    %54 = vector.broadcast %cst_31 : f32 to vector<16x256xf32>
    %55 = arith.mulf %54, %53 : vector<16x256xf32>
    %56 = arith.addf %50, %55 : vector<16x256xf32>
    %cst_32 = arith.constant dense<0.000000e+00> : vector<256xf32>
    %57 = vector.multi_reduction <add>, %56, %cst_32 [0] : vector<16x256xf32> to vector<256xf32>
    %58 = vector.shape_cast %57 : vector<256xf32> to vector<1x256xf32>
    %cst_33 = arith.constant 0.000000e+00 : f32
    %59 = vector.broadcast %cst_33 : f32 to vector<1x256xf32>
    %60 = arith.subf %59, %58 : vector<1x256xf32>
    %cst_34 = arith.constant 29.4060326 : f32
    %61 = vector.broadcast %cst_34 : f32 to vector<1x256xf32>
    %62 = arith.subf %60, %61 : vector<1x256xf32>
    %c0_35 = arith.constant 0 : index
    %c0_36 = arith.constant 0 : index
    %63 = vector.load %arg6[%c0_35, %c0_36] : memref<1x256xf32, #tpu.memory_space<vmem>>, vector<1x256xf32>
    tpu.vector_store %arg6[%c0_35, %c0_36], %62 {strides = array<i32>} : memref<1x256xf32, #tpu.memory_space<vmem>>, vector<1x256xf32>,
    return
  }
  func.func @transform_0(%arg0: i32) -> (i32, i32) {
    %c0_i32 = arith.constant 0 : i32
    %c0_i32_0 = arith.constant 0 : i32
    return %c0_i32, %arg0 : i32, i32
  }
  func.func @transform_1(%arg0: i32) -> (i32, i32, i32) {
    %c0_i32 = arith.constant 0 : i32
    %c0_i32_0 = arith.constant 0 : i32
    %c0_i32_1 = arith.constant 0 : i32
    %c0_i32_2 = arith.constant 0 : i32
    return %c0_i32, %c0_i32_0, %c0_i32_1 : i32, i32, i32
  }
  func.func @transform_2(%arg0: i32) -> (i32, i32, i32) {
    %c0_i32 = arith.constant 0 : i32
    %c0_i32_0 = arith.constant 0 : i32
    %c0_i32_1 = arith.constant 0 : i32
    %c0_i32_2 = arith.constant 0 : i32
    return %c0_i32, %c0_i32_0, %c0_i32_1 : i32, i32, i32
  }
  func.func @transform_3(%arg0: i32) -> (i32, i32, i32) {
    %c0_i32 = arith.constant 0 : i32
    %c0_i32_0 = arith.constant 0 : i32
    %c0_i32_1 = arith.constant 0 : i32
    %c0_i32_2 = arith.constant 0 : i32
    return %c0_i32, %c0_i32_0, %c0_i32_1 : i32, i32, i32
  }
  func.func @transform_4(%arg0: i32) -> (i32, i32, i32) {
    %c0_i32 = arith.constant 0 : i32
    %c0_i32_0 = arith.constant 0 : i32
    %c0_i32_1 = arith.constant 0 : i32
    %c0_i32_2 = arith.constant 0 : i32
    return %c0_i32, %c0_i32_0, %c0_i32_1 : i32, i32, i32
  }
  func.func @transform_5(%arg0: i32) -> (i32, i32) {
    %c0_i32 = arith.constant 0 : i32
    %c0_i32_0 = arith.constant 0 : i32
    return %c0_i32, %arg0 : i32, i32
  }
}

</mosaic_0001>

<llo_original>
// kernel: tpu_custom_call.1
$region0: #{tpu_custom_call.1}
  #allocation0 [shape = 'u32[]', space=smem, size = 0x4, offset = 0x4, fixed_abs, tag = 'smem constant byte address 0x4 - core index']
  #allocation1 [shape = 'u32[144,128]{1,0:T(1,128)}', space=vmem, size = 0x12000, scoped, tag = 'internal scratch']
  %s0 = inlined_call_operand.vmem [shape: f32[32,256], index: 0, kind: input, shape index: {}]
  %s1 = inlined_call_operand.vmem [shape: f32[2,32,16], index: 1, kind: input, shape index: {}]
  %s2 = inlined_call_operand.vmem [shape: f32[2,32,1], index: 2, kind: input, shape index: {}]
  %s3 = inlined_call_operand.vmem [shape: f32[2,32,32], index: 3, kind: input, shape index: {}]
  %s4 = inlined_call_operand.vmem [shape: f32[2,32,1], index: 4, kind: input, shape index: {}]
  %s5 = inlined_call_operand.hbm [shape: f32[1,256], index: 5, kind: output, shape index: {}]
  %s6 = sld [smem:[#allocation0]]
  $region30: #{tpu_custom_call.1} parent=0
    _
  %s8 = ssub.s32 1, %s6
  %s9 = scalar_select 0, %s8, %s6
  $region1: #{tpu_custom_call.1} parent=0
    #allocation2 [shape = 'u8[1024]{0}', space=vmem, size = 0x400, scoped, tag = 'output window, operand 0, single buffered']
    #allocation3 [shape = 's32[1]{0}', space=sflag, size = 0x4, scoped, tag = 'scoped memory for tpu_custom_call.1']
    %10 = vsyncpa [#allocation3], 0
    // Predicated region
    $region2: #{tpu_custom_call.1} parent=1 // pred_check
      _
    $region3: #{tpu_custom_call.1} parent=1 // pred_check_branch
      %12 = sbr.rel (0) target = $region5
    $region4: #{tpu_custom_call.1} parent=1 // pred_region
      _
    $region5: #{tpu_custom_call.1} parent=1 // pred_fallthru
      _
    // Predicated region
    $region6: #{tpu_custom_call.1} parent=1 // pred_check
      _
    $region7: #{tpu_custom_call.1} parent=1 // pred_check_branch
      %14 = sbr.rel (0) target = $region9
    $region8: #{tpu_custom_call.1} parent=1 // pred_region
      _
    $region9: #{tpu_custom_call.1} parent=1 // pred_fallthru
      _
    // Predicated region
    $region10: #{tpu_custom_call.1} parent=1 // pred_check
      _
    $region11: #{tpu_custom_call.1} parent=1 // pred_check_branch
      %16 = sbr.rel (0) target = $region13
    $region12: #{tpu_custom_call.1} parent=1 // pred_region
      _
    $region13: #{tpu_custom_call.1} parent=1 // pred_fallthru
      _
    // Predicated region
    $region14: #{tpu_custom_call.1} parent=1 // pred_check
      _
    $region15: #{tpu_custom_call.1} parent=1 // pred_check_branch
      %18 = sbr.rel (0) target = $region17
    $region16: #{tpu_custom_call.1} parent=1 // pred_region
      _
    $region17: #{tpu_custom_call.1} parent=1 // pred_fallthru
      _
    // Predicated region
    $region18: #{tpu_custom_call.1} parent=1 // pred_check
      _
    $region19: #{tpu_custom_call.1} parent=1 // pred_check_branch
      %20 = sbr.rel (0) target = $region21
    $region20: #{tpu_custom_call.1} parent=1 // pred_region
      _
    $region21: #{tpu_custom_call.1} parent=1 // pred_fallthru
      _
    %v21 = vld [vmem:[%s0] sm:$0xff]
    %v22 = vld [vmem:[%s0 + $0x8] sm:$0xff]
    %v23 = vld [vmem:[%s0 + $0x10] sm:$0xff]
    %v24 = vld [vmem:[%s0 + $0x18] sm:$0xff]
    %v25 = vld [vmem:[%s0 + $0x20] sm:$0xff]
    %v26 = vld [vmem:[%s0 + $0x28] sm:$0xff]
    %v27 = vld [vmem:[%s0 + $0x30] sm:$0xff]
    %v28 = vld [vmem:[%s0 + $0x38] sm:$0xff]
    %v29 = vld [vmem:[%s1] sm:$0xff]
    %v30 = vld [vmem:[%s1 + $0x8] sm:$0xff]
    %v31 = vld [vmem:[%s1 + $0x10] sm:$0xff]
    %v32 = vld [vmem:[%s1 + $0x18] sm:$0xff]
    %v33 = vld [vmem:[%s2] sm:$0xff]
    %v34 = vld [vmem:[%s2 + $0x8] sm:$0xff]
    %v35 = vld [vmem:[%s2 + $0x10] sm:$0xff]
    %v36 = vld [vmem:[%s2 + $0x18] sm:$0xff]
    %38 = vset.pattern.permute.xlu0 0
    %39 = vperm.xlu0 %38, %v33
    %v40 = vpop.permute.xlu0 %39
    %43 = vset.pattern.permute.xlu0 0
    %44 = vperm.xlu0 %43, %v34
    %v45 = vpop.permute.xlu0 %44
    %48 = vset.pattern.permute.xlu0 0
    %49 = vperm.xlu0 %48, %v35
    %v50 = vpop.permute.xlu0 %49
    %53 = vset.pattern.permute.xlu0 0
    %54 = vperm.xlu0 %53, %v36
    %v55 = vpop.permute.xlu0 %54
    %vm57 = vcmask 130048
    %v59 = vsel %vm57, %v29, 0
    %v62 = vsel %vm57, %v30, 0
    %v65 = vsel %vm57, %v31, 0
    %v68 = vsel %vm57, %v32, 0
    %70 = vmatprep.subr.mxu0 0.0
    %71 = vmatpush1.msra.mxu0 0.0
    %72 = vmatprep.subr.mxu0 0.0
    %73 = vmatpush1.msra.mxu0 0.0
    %74 = vmatprep.subr.mxu0 0.0
    %75 = vmatpush1.msra.mxu0 0.0
    %76 = vmatprep.subr.mxu0 0.0
    %77 = vmatpush1.msra.mxu0 0.0
    %78 = vmatprep.subr.mxu0 0.0
    %79 = vmatpush1.msra.mxu0 0.0
    %80 = vmatprep.subr.mxu0 0.0
    %81 = vmatpush1.msra.mxu0 0.0
    %82 = vmatprep.subr.mxu0 0.0
    %83 = vmatpush1.msra.mxu0 0.0
    %84 = vmatprep.subr.mxu0 0.0
    %85 = vmatpush1.msra.mxu0 0.0
    %86 = vmatprep.subr.mxu0 0.0
    %87 = vmatpush1.msra.mxu0 0.0
    %88 = vmatprep.subr.mxu0 0.0
    %89 = vmatpush1.msra.mxu0 0.0
    %90 = vmatprep.subr.mxu0 0.0
    %91 = vmatpush1.msra.mxu0 0.0
    %92 = vmatprep.subr.mxu0 0.0
    %93 = vmatpush1.msra.mxu0 0.0
    %94 = vmatprep.subr.mxu0 0.0
    %95 = vmatpush1.msra.mxu0 0.0
    %96 = vmatprep.subr.mxu0 0.0
    %97 = vmatpush1.msra.mxu0 0.0
    %98 = vmatprep.subr.mxu0 %v24
    %99 = vmatpush1.msra.mxu0 %v23
    %100 = vmatprep.subr.mxu0 %v22
    %101 = vmatpush1.msra.mxu0 %v21
    %102 = vmatprep.subr.mxu0 0.0
    %103 = vmatpush2.msra.mxu0 0.0
    %104 = vmatprep.subr.mxu0 0.0
    %105 = vmatpush2.msra.mxu0 0.0
    %106 = vmatprep.subr.mxu0 0.0
    %107 = vmatpush2.msra.mxu0 0.0
    %108 = vmatprep.subr.mxu0 0.0
    %109 = vmatpush2.msra.mxu0 0.0
    %110 = vmatprep.subr.mxu0 0.0
    %111 = vmatpush2.msra.mxu0 0.0
    %112 = vmatprep.subr.mxu0 0.0
    %113 = vmatpush2.msra.mxu0 0.0
    %114 = vmatprep.subr.mxu0 0.0
    %115 = vmatpush2.msra.mxu0 0.0
    %116 = vmatprep.subr.mxu0 0.0
    %117 = vmatpush2.msra.mxu0 0.0
    %118 = vmatprep.subr.mxu0 0.0
    %119 = vmatpush2.msra.mxu0 0.0
    %120 = vmatprep.subr.mxu0 0.0
    %121 = vmatpush2.msra.mxu0 0.0
    %122 = vmatprep.subr.mxu0 0.0
    %123 = vmatpush2.msra.mxu0 0.0
    %124 = vmatprep.subr.mxu0 0.0
    %125 = vmatpush2.msra.mxu0 0.0
    %126 = vmatprep.subr.mxu0 0.0
    %127 = vmatpush2.msra.mxu0 0.0
    %128 = vmatprep.subr.mxu0 0.0
    %129 = vmatpush2.msra.mxu0 0.0
    %130 = vmatprep.subr.mxu0 0.0
    %131 = vmatpush2.msra.mxu0 0.0
    %132 = vmatprep.subr.mxu0 0.0
    %133 = vmatpush2.msra.mxu0 0.0
    %134 = vmatprep.mubr.f32.mxu0 0.0
    %135 = vmatmul.mubr.f32.gmra.mxu0 %v59
    %v136 = vpop.f32.mrf.mxu0
    %v137 = vadd.f32 %v40, %v136
    %v138 = vpop.f32.mrf.mxu0
    %v139 = vadd.f32 %v40, %v138
    %140 = vmatprep.mubr.f32.mxu0 0.0
    %141 = vmatmul.mubr.f32.gmra.mxu0 %v62
    %v142 = vpop.f32.mrf.mxu0
    %v143 = vadd.f32 %v45, %v142
    %v144 = vpop.f32.mrf.mxu0
    %v145 = vadd.f32 %v45, %v144
    %146 = vmatprep.mubr.f32.mxu0 0.0
    %147 = vmatmul.mubr.f32.gmra.mxu0 %v65
    %v148 = vpop.f32.mrf.mxu0
    %v149 = vadd.f32 %v50, %v148
    %v150 = vpop.f32.mrf.mxu0
    %v151 = vadd.f32 %v50, %v150
    %152 = vmatprep.mubr.f32.mxu0 0.0
    %153 = vmatmul.mubr.f32.gmra.mxu0 %v68
    %v154 = vpop.f32.mrf.mxu0
    %v155 = vadd.f32 %v55, %v154
    %v156 = vpop.f32.mrf.mxu0
    %v157 = vadd.f32 %v55, %v156
    %158 = vdwg.mxu0
    %v159 = vtanh.pop %v137
    %v160 = vtanh.pop %v139
    %v161 = vtanh.pop %v143
    %v162 = vtanh.pop %v145
    %v163 = vtanh.pop %v149
    %v164 = vtanh.pop %v151
    %v165 = vtanh.pop %v155
    %v166 = vtanh.pop %v157
    %v167 = vld [vmem:[%s3] sm:$0xff]
    %v168 = vld [vmem:[%s3 + $0x8] sm:$0xff]
    %v169 = vld [vmem:[%s3 + $0x10] sm:$0xff]
    %v170 = vld [vmem:[%s3 + $0x18] sm:$0xff]
    %v171 = vld [vmem:[%s4] sm:$0xff]
    %v172 = vld [vmem:[%s4 + $0x8] sm:$0xff]
    %v173 = vld [vmem:[%s4 + $0x10] sm:$0xff]
    %v174 = vld [vmem:[%s4 + $0x18] sm:$0xff]
    %176 = vset.pattern.permute.xlu0 0
    %177 = vperm.xlu0 %176, %v171
    %v178 = vpop.permute.xlu0 %177
    %181 = vset.pattern.permute.xlu0 0
    %182 = vperm.xlu0 %181, %v172
    %v183 = vpop.permute.xlu0 %182
    %186 = vset.pattern.permute.xlu0 0
    %187 = vperm.xlu0 %186, %v173
    %v188 = vpop.permute.xlu0 %187
    %191 = vset.pattern.permute.xlu0 0
    %192 = vperm.xlu0 %191, %v174
    %v193 = vpop.permute.xlu0 %192
    %vm195 = vcmask 261120
    %v197 = vsel %vm195, %v167, 0
    %v200 = vsel %vm195, %v168, 0
    %v203 = vsel %vm195, %v169, 0
    %v206 = vsel %vm195, %v170, 0
    %208 = vmatprep.subr.mxu0 0.0
    %209 = vmatpush1.msra.mxu0 0.0
    %210 = vmatprep.subr.mxu0 0.0
    %211 = vmatpush1.msra.mxu0 0.0
    %212 = vmatprep.subr.mxu0 0.0
    %213 = vmatpush1.msra.mxu0 0.0
    %214 = vmatprep.subr.mxu0 0.0
    %215 = vmatpush1.msra.mxu0 0.0
    %216 = vmatprep.subr.mxu0 0.0
    %217 = vmatpush1.msra.mxu0 0.0
    %218 = vmatprep.subr.mxu0 0.0
    %219 = vmatpush1.msra.mxu0 0.0
    %220 = vmatprep.subr.mxu0 0.0
    %221 = vmatpush1.msra.mxu0 0.0
    %222 = vmatprep.subr.mxu0 0.0
    %223 = vmatpush1.msra.mxu0 0.0
    %224 = vmatprep.subr.mxu0 0.0
    %225 = vmatpush1.msra.mxu0 0.0
    %226 = vmatprep.subr.mxu0 0.0
    %227 = vmatpush1.msra.mxu0 0.0
    %228 = vmatprep.subr.mxu0 0.0
    %229 = vmatpush1.msra.mxu0 0.0
    %230 = vmatprep.subr.mxu0 0.0
    %231 = vmatpush1.msra.mxu0 0.0
    %232 = vmatprep.subr.mxu0 %v166
    %233 = vmatpush1.msra.mxu0 %v165
    %234 = vmatprep.subr.mxu0 %v164
    %235 = vmatpush1.msra.mxu0 %v163
    %236 = vmatprep.subr.mxu0 %v162
    %237 = vmatpush1.msra.mxu0 %v161
    %238 = vmatprep.subr.mxu0 %v160
    %239 = vmatpush1.msra.mxu0 %v159
    %240 = vmatprep.subr.mxu0 0.0
    %241 = vmatpush2.msra.mxu0 0.0
    %242 = vmatprep.subr.mxu0 0.0
    %243 = vmatpush2.msra.mxu0 0.0
    %244 = vmatprep.subr.mxu0 0.0
    %245 = vmatpush2.msra.mxu0 0.0
    %246 = vmatprep.subr.mxu0 0.0
    %247 = vmatpush2.msra.mxu0 0.0
    %248 = vmatprep.subr.mxu0 0.0
    %249 = vmatpush2.msra.mxu0 0.0
    %250 = vmatprep.subr.mxu0 0.0
    %251 = vmatpush2.msra.mxu0 0.0
    %252 = vmatprep.subr.mxu0 0.0
    %253 = vmatpush2.msra.mxu0 0.0
    %254 = vmatprep.subr.mxu0 0.0
    %255 = vmatpush2.msra.mxu0 0.0
    %256 = vmatprep.subr.mxu0 0.0
    %257 = vmatpush2.msra.mxu0 0.0
    %258 = vmatprep.subr.mxu0 0.0
    %259 = vmatpush2.msra.mxu0 0.0
    %260 = vmatprep.subr.mxu0 0.0
    %261 = vmatpush2.msra.mxu0 0.0
    %262 = vmatprep.subr.mxu0 0.0
    %263 = vmatpush2.msra.mxu0 0.0
    %264 = vmatprep.subr.mxu0 0.0
    %265 = vmatpush2.msra.mxu0 0.0
    %266 = vmatprep.subr.mxu0 0.0
    %267 = vmatpush2.msra.mxu0 0.0
    %268 = vmatprep.subr.mxu0 0.0
    %269 = vmatpush2.msra.mxu0 0.0
    %270 = vmatprep.subr.mxu0 0.0
    %271 = vmatpush2.msra.mxu0 0.0
    %272 = vmatprep.mubr.f32.mxu0 0.0
    %273 = vmatmul.mubr.f32.gmra.mxu0 %v197
    %v274 = vpop.f32.mrf.mxu0
    %v275 = vadd.f32 %v178, %v274
    %v276 = vpop.f32.mrf.mxu0
    %v277 = vadd.f32 %v178, %v276
    %278 = vmatprep.mubr.f32.mxu0 0.0
    %279 = vmatmul.mubr.f32.gmra.mxu0 %v200
    %v280 = vpop.f32.mrf.mxu0
    %v281 = vadd.f32 %v183, %v280
    %v282 = vpop.f32.mrf.mxu0
    %v283 = vadd.f32 %v183, %v282
    %284 = vmatprep.mubr.f32.mxu0 0.0
    %285 = vmatmul.mubr.f32.gmra.mxu0 %v203
    %v286 = vpop.f32.mrf.mxu0
    %v287 = vadd.f32 %v188, %v286
    %v288 = vpop.f32.mrf.mxu0
    %v289 = vadd.f32 %v188, %v288
    %290 = vmatprep.mubr.f32.mxu0 0.0
    %291 = vmatmul.mubr.f32.gmra.mxu0 %v206
    %v292 = vpop.f32.mrf.mxu0
    %v293 = vadd.f32 %v193, %v292
    %v294 = vpop.f32.mrf.mxu0
    %v295 = vadd.f32 %v193, %v294
    %296 = vdwg.mxu0
    %v297 = vtanh.pop %v275
    %v298 = vtanh.pop %v277
    %v299 = vtanh.pop %v281
    %v300 = vtanh.pop %v283
    %v301 = vsub.f32 %v25, %v287
    %v302 = vsub.f32 %v26, %v289
    %v303 = vsub.f32 %v27, %v293
    %v304 = vsub.f32 %v28, %v295
    %v305 = vsub.f32 0.0, %v297
    %v306 = vsub.f32 0.0, %v298
    %v307 = vsub.f32 0.0, %v299
    %v308 = vsub.f32 0.0, %v300
    %v309 = vmul.f32 %v305, 1.442695
    %v310 = vpow.pop %v309
    %v311 = vmul.f32 %v306, 1.442695
    %v312 = vpow.pop %v311
    %v313 = vmul.f32 %v307, 1.442695
    %v314 = vpow.pop %v313
    %v315 = vmul.f32 %v308, 1.442695
    %v316 = vpow.pop %v315
    %v317 = vmul.f32 %v301, %v310
    %v318 = vmul.f32 %v302, %v312
    %v319 = vmul.f32 %v303, %v314
    %v320 = vmul.f32 %v304, %v316
    %v321 = vadd.f32 %v297, 0.0
    %v322 = vadd.f32 %v298, 0.0
    %v323 = vadd.f32 %v299, 0.0
    %v324 = vadd.f32 %v300, 0.0
    %s325 = scalar_lea.vmem %s1, 32
    %v326 = vld [vmem:[%s325] sm:$0xff]
    %v327 = vld [vmem:[%s325 + $0x8] sm:$0xff]
    %v328 = vld [vmem:[%s325 + $0x10] sm:$0xff]
    %v329 = vld [vmem:[%s325 + $0x18] sm:$0xff]
    %s330 = scalar_lea.vmem %s2, 32
    %v331 = vld [vmem:[%s330] sm:$0xff]
    %v332 = vld [vmem:[%s330 + $0x8] sm:$0xff]
    %v333 = vld [vmem:[%s330 + $0x10] sm:$0xff]
    %v334 = vld [vmem:[%s330 + $0x18] sm:$0xff]
    %336 = vset.pattern.permute.xlu0 0
    %337 = vperm.xlu0 %336, %v331
    %v338 = vpop.permute.xlu0 %337
    %341 = vset.pattern.permute.xlu0 0
    %342 = vperm.xlu0 %341, %v332
    %v343 = vpop.permute.xlu0 %342
    %346 = vset.pattern.permute.xlu0 0
    %347 = vperm.xlu0 %346, %v333
    %v348 = vpop.permute.xlu0 %347
    %351 = vset.pattern.permute.xlu0 0
    %352 = vperm.xlu0 %351, %v334
    %v353 = vpop.permute.xlu0 %352
    %v356 = vsel %vm57, %v326, 0
    %v359 = vsel %vm57, %v327, 0
    %v362 = vsel %vm57, %v328, 0
    %v365 = vsel %vm57, %v329, 0
    %367 = vmatprep.subr.mxu0 0.0
    %368 = vmatpush1.msra.mxu0 0.0
    %369 = vmatprep.subr.mxu0 0.0
    %370 = vmatpush1.msra.mxu0 0.0
    %371 = vmatprep.subr.mxu0 0.0
    %372 = vmatpush1.msra.mxu0 0.0
    %373 = vmatprep.subr.mxu0 0.0
    %374 = vmatpush1.msra.mxu0 0.0
    %375 = vmatprep.subr.mxu0 0.0
    %376 = vmatpush1.msra.mxu0 0.0
    %377 = vmatprep.subr.mxu0 0.0
    %378 = vmatpush1.msra.mxu0 0.0
    %379 = vmatprep.subr.mxu0 0.0
    %380 = vmatpush1.msra.mxu0 0.0
    %381 = vmatprep.subr.mxu0 0.0
    %382 = vmatpush1.msra.mxu0 0.0
    %383 = vmatprep.subr.mxu0 0.0
    %384 = vmatpush1.msra.mxu0 0.0
    %385 = vmatprep.subr.mxu0 0.0
    %386 = vmatpush1.msra.mxu0 0.0
    %387 = vmatprep.subr.mxu0 0.0
    %388 = vmatpush1.msra.mxu0 0.0
    %389 = vmatprep.subr.mxu0 0.0
    %390 = vmatpush1.msra.mxu0 0.0
    %391 = vmatprep.subr.mxu0 0.0
    %392 = vmatpush1.msra.mxu0 0.0
    %393 = vmatprep.subr.mxu0 0.0
    %394 = vmatpush1.msra.mxu0 0.0
    %395 = vmatprep.subr.mxu0 %v320
    %396 = vmatpush1.msra.mxu0 %v319
    %397 = vmatprep.subr.mxu0 %v318
    %398 = vmatpush1.msra.mxu0 %v317
    %399 = vmatprep.subr.mxu0 0.0
    %400 = vmatpush2.msra.mxu0 0.0
    %401 = vmatprep.subr.mxu0 0.0
    %402 = vmatpush2.msra.mxu0 0.0
    %403 = vmatprep.subr.mxu0 0.0
    %404 = vmatpush2.msra.mxu0 0.0
    %405 = vmatprep.subr.mxu0 0.0
    %406 = vmatpush2.msra.mxu0 0.0
    %407 = vmatprep.subr.mxu0 0.0
    %408 = vmatpush2.msra.mxu0 0.0
    %409 = vmatprep.subr.mxu0 0.0
    %410 = vmatpush2.msra.mxu0 0.0
    %411 = vmatprep.subr.mxu0 0.0
    %412 = vmatpush2.msra.mxu0 0.0
    %413 = vmatprep.subr.mxu0 0.0
    %414 = vmatpush2.msra.mxu0 0.0
    %415 = vmatprep.subr.mxu0 0.0
    %416 = vmatpush2.msra.mxu0 0.0
    %417 = vmatprep.subr.mxu0 0.0
    %418 = vmatpush2.msra.mxu0 0.0
    %419 = vmatprep.subr.mxu0 0.0
    %420 = vmatpush2.msra.mxu0 0.0
    %421 = vmatprep.subr.mxu0 0.0
    %422 = vmatpush2.msra.mxu0 0.0
    %423 = vmatprep.subr.mxu0 0.0
    %424 = vmatpush2.msra.mxu0 0.0
    %425 = vmatprep.subr.mxu0 0.0
    %426 = vmatpush2.msra.mxu0 0.0
    %427 = vmatprep.subr.mxu0 0.0
    %428 = vmatpush2.msra.mxu0 0.0
    %429 = vmatprep.subr.mxu0 0.0
    %430 = vmatpush2.msra.mxu0 0.0
    %431 = vmatprep.mubr.f32.mxu0 0.0
    %432 = vmatmul.mubr.f32.gmra.mxu0 %v356
    %v433 = vpop.f32.mrf.mxu0
    %v434 = vadd.f32 %v338, %v433
    %v435 = vpop.f32.mrf.mxu0
    %v436 = vadd.f32 %v338, %v435
    %437 = vmatprep.mubr.f32.mxu0 0.0
    %438 = vmatmul.mubr.f32.gmra.mxu0 %v359
    %v439 = vpop.f32.mrf.mxu0
    %v440 = vadd.f32 %v343, %v439
    %v441 = vpop.f32.mrf.mxu0
    %v442 = vadd.f32 %v343, %v441
    %443 = vmatprep.mubr.f32.mxu0 0.0
    %444 = vmatmul.mubr.f32.gmra.mxu0 %v362
    %v445 = vpop.f32.mrf.mxu0
    %v446 = vadd.f32 %v348, %v445
    %v447 = vpop.f32.mrf.mxu0
    %v448 = vadd.f32 %v348, %v447
    %449 = vmatprep.mubr.f32.mxu0 0.0
    %450 = vmatmul.mubr.f32.gmra.mxu0 %v365
    %v451 = vpop.f32.mrf.mxu0
    %v452 = vadd.f32 %v353, %v451
    %v453 = vpop.f32.mrf.mxu0
    %v454 = vadd.f32 %v353, %v453
    %455 = vdwg.mxu0
    %v456 = vtanh.pop %v434
    %v457 = vtanh.pop %v436
    %v458 = vtanh.pop %v440
    %v459 = vtanh.pop %v442
    %v460 = vtanh.pop %v446
    %v461 = vtanh.pop %v448
    %v462 = vtanh.pop %v452
    %v463 = vtanh.pop %v454
    %s464 = scalar_lea.vmem %s3, 32
    %v465 = vld [vmem:[%s464] sm:$0xff]
    %v466 = vld [vmem:[%s464 + $0x8] sm:$0xff]
    %v467 = vld [vmem:[%s464 + $0x10] sm:$0xff]
    %v468 = vld [vmem:[%s464 + $0x18] sm:$0xff]
    %s469 = scalar_lea.vmem %s4, 32
    %v470 = vld [vmem:[%s469] sm:$0xff]
    %v471 = vld [vmem:[%s469 + $0x8] sm:$0xff]
    %v472 = vld [vmem:[%s469 + $0x10] sm:$0xff]
    %v473 = vld [vmem:[%s469 + $0x18] sm:$0xff]
    %475 = vset.pattern.permute.xlu0 0
    %476 = vperm.xlu0 %475, %v470
    %v477 = vpop.permute.xlu0 %476
    %480 = vset.pattern.permute.xlu0 0
    %481 = vperm.xlu0 %480, %v471
    %v482 = vpop.permute.xlu0 %481
    %485 = vset.pattern.permute.xlu0 0
    %486 = vperm.xlu0 %485, %v472
    %v487 = vpop.permute.xlu0 %486
    %490 = vset.pattern.permute.xlu0 0
    %491 = vperm.xlu0 %490, %v473
    %v492 = vpop.permute.xlu0 %491
    %v495 = vsel %vm195, %v465, 0
    %v498 = vsel %vm195, %v466, 0
    %v501 = vsel %vm195, %v467, 0
    %v504 = vsel %vm195, %v468, 0
    %506 = vmatprep.subr.mxu0 0.0
    %507 = vmatpush1.msra.mxu0 0.0
    %508 = vmatprep.subr.mxu0 0.0
    %509 = vmatpush1.msra.mxu0 0.0
    %510 = vmatprep.subr.mxu0 0.0
    %511 = vmatpush1.msra.mxu0 0.0
    %512 = vmatprep.subr.mxu0 0.0
    %513 = vmatpush1.msra.mxu0 0.0
    %514 = vmatprep.subr.mxu0 0.0
    %515 = vmatpush1.msra.mxu0 0.0
    %516 = vmatprep.subr.mxu0 0.0
    %517 = vmatpush1.msra.mxu0 0.0
    %518 = vmatprep.subr.mxu0 0.0
    %519 = vmatpush1.msra.mxu0 0.0
    %520 = vmatprep.subr.mxu0 0.0
    %521 = vmatpush1.msra.mxu0 0.0
    %522 = vmatprep.subr.mxu0 0.0
    %523 = vmatpush1.msra.mxu0 0.0
    %524 = vmatprep.subr.mxu0 0.0
    %525 = vmatpush1.msra.mxu0 0.0
    %526 = vmatprep.subr.mxu0 0.0
    %527 = vmatpush1.msra.mxu0 0.0
    %528 = vmatprep.subr.mxu0 0.0
    %529 = vmatpush1.msra.mxu0 0.0
    %530 = vmatprep.subr.mxu0 %v463
    %531 = vmatpush1.msra.mxu0 %v462
    %532 = vmatprep.subr.mxu0 %v461
    %533 = vmatpush1.msra.mxu0 %v460
    %534 = vmatprep.subr.mxu0 %v459
    %535 = vmatpush1.msra.mxu0 %v458
    %536 = vmatprep.subr.mxu0 %v457
    %537 = vmatpush1.msra.mxu0 %v456
    %538 = vmatprep.subr.mxu0 0.0
    %539 = vmatpush2.msra.mxu0 0.0
    %540 = vmatprep.subr.mxu0 0.0
    %541 = vmatpush2.msra.mxu0 0.0
    %542 = vmatprep.subr.mxu0 0.0
    %543 = vmatpush2.msra.mxu0 0.0
    %544 = vmatprep.subr.mxu0 0.0
    %545 = vmatpush2.msra.mxu0 0.0
    %546 = vmatprep.subr.mxu0 0.0
    %547 = vmatpush2.msra.mxu0 0.0
    %548 = vmatprep.subr.mxu0 0.0
    %549 = vmatpush2.msra.mxu0 0.0
    %550 = vmatprep.subr.mxu0 0.0
    %551 = vmatpush2.msra.mxu0 0.0
    %552 = vmatprep.subr.mxu0 0.0
    %553 = vmatpush2.msra.mxu0 0.0
    %554 = vmatprep.subr.mxu0 0.0
    %555 = vmatpush2.msra.mxu0 0.0
    %556 = vmatprep.subr.mxu0 0.0
    %557 = vmatpush2.msra.mxu0 0.0
    %558 = vmatprep.subr.mxu0 0.0
    %559 = vmatpush2.msra.mxu0 0.0
    %560 = vmatprep.subr.mxu0 0.0
    %561 = vmatpush2.msra.mxu0 0.0
    %562 = vmatprep.subr.mxu0 0.0
    %563 = vmatpush2.msra.mxu0 0.0
    %564 = vmatprep.subr.mxu0 0.0
    %565 = vmatpush2.msra.mxu0 0.0
    %566 = vmatprep.subr.mxu0 0.0
    %567 = vmatpush2.msra.mxu0 0.0
    %568 = vmatprep.subr.mxu0 0.0
    %569 = vmatpush2.msra.mxu0 0.0
    %570 = vmatprep.mubr.f32.mxu0 0.0
    %571 = vmatmul.mubr.f32.gmra.mxu0 %v495
    %v572 = vpop.f32.mrf.mxu0
    %v573 = vadd.f32 %v477, %v572
    %v574 = vpop.f32.mrf.mxu0
    %v575 = vadd.f32 %v477, %v574
    %576 = vmatprep.mubr.f32.mxu0 0.0
    %577 = vmatmul.mubr.f32.gmra.mxu0 %v498
    %v578 = vpop.f32.mrf.mxu0
    %v579 = vadd.f32 %v482, %v578
    %v580 = vpop.f32.mrf.mxu0
    %v581 = vadd.f32 %v482, %v580
    %582 = vmatprep.mubr.f32.mxu0 0.0
    %583 = vmatmul.mubr.f32.gmra.mxu0 %v501
    %v584 = vpop.f32.mrf.mxu0
    %v585 = vadd.f32 %v487, %v584
    %v586 = vpop.f32.mrf.mxu0
    %v587 = vadd.f32 %v487, %v586
    %588 = vmatprep.mubr.f32.mxu0 0.0
    %589 = vmatmul.mubr.f32.gmra.mxu0 %v504
    %v590 = vpop.f32.mrf.mxu0
    %v591 = vadd.f32 %v492, %v590
    %v592 = vpop.f32.mrf.mxu0
    %v593 = vadd.f32 %v492, %v592
    %594 = vdwg.mxu0
    %v595 = vtanh.pop %v573
    %v596 = vtanh.pop %v575
    %v597 = vtanh.pop %v579
    %v598 = vtanh.pop %v581
    %v599 = vsub.f32 %v21, %v585
    %v600 = vsub.f32 %v22, %v587
    %v601 = vsub.f32 %v23, %v591
    %v602 = vsub.f32 %v24, %v593
    %v603 = vsub.f32 0.0, %v595
    %v604 = vsub.f32 0.0, %v596
    %v605 = vsub.f32 0.0, %v597
    %v606 = vsub.f32 0.0, %v598
    %v607 = vmul.f32 %v603, 1.442695
    %v608 = vpow.pop %v607
    %v609 = vmul.f32 %v604, 1.442695
    %v610 = vpow.pop %v609
    %v611 = vmul.f32 %v605, 1.442695
    %v612 = vpow.pop %v611
    %v613 = vmul.f32 %v606, 1.442695
    %v614 = vpow.pop %v613
    %v615 = vmul.f32 %v599, %v608
    %v616 = vmul.f32 %v600, %v610
    %v617 = vmul.f32 %v601, %v612
    %v618 = vmul.f32 %v602, %v614
    %v619 = vadd.f32 %v321, %v595
    %v620 = vadd.f32 %v322, %v596
    %v621 = vadd.f32 %v323, %v597
    %v622 = vadd.f32 %v324, %v598
    %v623 = vmul.f32 %v615, %v615
    %v624 = vmul.f32 %v616, %v616
    %v625 = vmul.f32 %v617, %v617
    %v626 = vmul.f32 %v618, %v618
    %v627 = vmul.f32 %v317, %v317
    %v628 = vmul.f32 %v318, %v318
    %v629 = vmul.f32 %v319, %v319
    %v630 = vmul.f32 %v320, %v320
    %v631 = vadd.f32 %v623, %v627
    %v632 = vadd.f32 %v624, %v628
    %v633 = vadd.f32 %v625, %v629
    %v634 = vadd.f32 %v626, %v630
    %v635 = vmul.f32 %v631, 0.5
    %v636 = vmul.f32 %v632, 0.5
    %v637 = vmul.f32 %v633, 0.5
    %v638 = vmul.f32 %v634, 0.5
    %v639 = vadd.f32 %v619, %v635
    %v640 = vadd.f32 %v620, %v636
    %v641 = vadd.f32 %v621, %v637
    %v642 = vadd.f32 %v622, %v638
    %v643 = vadd.f32 %v639, %v641
    %v644 = vrot.slane %v643, 4
    %v645 = vadd.f32 %v643, %v644
    %v646 = vrot.slane %v645, 2
    %v647 = vadd.f32 %v645, %v646
    %v648 = vrot.slane %v647, 1
    %v649 = vadd.f32 %v647, %v648
    %v650 = vadd.f32 %v640, %v642
    %v651 = vrot.slane %v650, 4
    %v652 = vadd.f32 %v650, %v651
    %v653 = vrot.slane %v652, 2
    %v654 = vadd.f32 %v652, %v653
    %v655 = vrot.slane %v654, 1
    %v656 = vadd.f32 %v654, %v655
    %v657 = vsub.f32 0.0, %v649
    %v658 = vsub.f32 0.0, %v656
    %v659 = vsub.f32 %v657, 29.406033
    %v660 = vsub.f32 %v658, 29.406033
    %v663 = vcombine.low %v659, %v660
    %v665 = vunpack.c.l.s4 1966171168
    %v666 = vunpack.c.0.s8 %v665
    %v667 = vlaneseq
    %v668 = vshrl.u32 %v667, 7
    %v669 = vsub.s32 %v666, %v668
    %v670 = vrot.slane %v663, %v669
    %v672 = vunpack.c.l.s4 1966171168
    %v673 = vunpack.c.0.s8 %v672
    %v674 = vlaneseq
    %v675 = vshrl.u32 %v674, 7
    %v676 = vsub.s32 %v673, %v675
    %v677 = vrot.slane %v670, %v676
    %v679 = vlaneseq
    %vm680 = vcmp.ge.s32.totalorder %v679, 0
    %vm681 = vcmp.lt.s32.totalorder %v679, 256
    %vm682 = vmand %vm680, %vm681
    %683 = vst.msk [vmem:[#allocation2] sm:$0x3] %vm682, %v677
    // Predicated region
    $region22: #{tpu_custom_call.1} parent=1 // pred_check
      _
    $region23: #{tpu_custom_call.1} parent=1 // pred_check_branch
      %685 = sbr.rel (0) target = $region25
    $region24: #{tpu_custom_call.1} parent=1 // pred_region
      %s687 = ssub.s32 32, 32
      %688 = vsyncadd [#allocation3], %s687
      %s690 = sshll.u32 [#allocation2], 4
      %s691 = int_to_ptr.vmem [resolvable:$true] %s690
      %693 = dma.vmem_to_hbm [thread:$0]  %s691, 32, %s5, [#allocation3]
    $region25: #{tpu_custom_call.1} parent=1 // pred_fallthru
      _
    // Predicated region
    $region26: #{tpu_custom_call.1} parent=1 // pred_check
      _
    $region27: #{tpu_custom_call.1} parent=1 // pred_check_branch
      %695 = sbr.rel (0) target = $region29
    $region28: #{tpu_custom_call.1} parent=1 // pred_region
      %696 = dma.done [#allocation3], 32
    $region29: #{tpu_custom_call.1} parent=1 // pred_fallthru
      _
    %697 = vsyncpa [#allocation3], 1

</llo_original>
